<compile_context>
chip_gen: v7x
topology: tpu7x:2x2x1
jax: 0.10.0
libtpu: 0.0.40
codegen_flags: <defaults>
</compile_context>

<pallas_src>
import jax
import jax.numpy as jnp
from jax.experimental import pallas as pl
from jax.experimental.pallas import tpu as pltpu


def _round_up(x, m):
    return ((x + m - 1) // m) * m


def _encoder_config(num_types, emb_dim, table_dtype, out_dtype):
    """Static layout decisions shared by the table builder and the kernel wrapper."""
    if num_types < 1:
        raise ValueError(f"Invalid 'node_encoder_num_types': {num_types}")
    # Pack rpp consecutive nodes into the 128-lane dim for a lane-dense output slab.
    rpp = 128 // emb_dim if (emb_dim <= 128 and 128 % emb_dim == 0) else 1
    # rpp == 1 fallback: pad the embedding columns up to a multiple of 128 so the
    # output stays lane-dense (no masked vst.msk stores).
    emb_pad = emb_dim if rpp > 1 else _round_up(emb_dim, 128)
    kdim = rpp * num_types            # MXU contraction dim (block-diag table rows)
    odim = rpp * emb_pad              # lane-dense output width (128 when packed)
    # ids + group offsets are exact in bf16 only up to 256 -> MXU replication path.
    use_mxu_rep = kdim <= 256
    # Exact f32 lookup of an f32 table needs the 3-part bf16 split; a bf16 table or a
    # bf16 output needs only the hi part (the bf16 cast of the row is the hi part).
    n_parts = 3 if (jnp.dtype(table_dtype) == jnp.float32
                    and jnp.dtype(out_dtype) == jnp.float32) else 1
    return dict(rpp=rpp, emb_pad=emb_pad, kdim=kdim, odim=odim,
                use_mxu_rep=use_mxu_rep, n_parts=n_parts)


def make_encoder_tables(emb_table, out_dtype=None):
    """Build the constant kernel inputs once per weight update (keep out of the hot path).

    Returns (sel, tab_stack, lane_row):
      sel       [rpp, kdim]            bf16 0/1 selector: replicates id j across group j
      tab_stack [kdim, n_parts*odim]   bf16 block-diagonal table, hi/mid/lo parts stacked
      lane_row  [1, kdim]              lane indices (f32 for the MXU path, i32 otherwise)
    """
    num_types, emb_dim = emb_table.shape
    out_dtype = jnp.dtype(out_dtype or emb_table.dtype)
    cfg = _encoder_config(num_types, emb_dim, emb_table.dtype, out_dtype)
    rpp, emb_pad, kdim, odim = cfg["rpp"], cfg["emb_pad"], cfg["kdim"], cfg["odim"]
    n_parts = cfg["n_parts"]

    tab = emb_table.astype(jnp.float32)
    tab = jnp.pad(tab, ((0, 0), (0, emb_pad - emb_dim)))

    # Exact bf16 splitting: hi = rnd(x), mid = rnd(x - hi), lo = x - hi - mid.
    parts, rem = [], tab
    for _ in range(n_parts):
        p = rem.astype(jnp.bfloat16)
        parts.append(p)
        rem = rem - p.astype(jnp.float32)

    # Block-diagonal expansion [num_types, emb_pad] -> [rpp*num_types, rpp*emb_pad]
    # built with one broadcast-multiply (no per-call scatter chain).
    eye = jnp.eye(rpp, dtype=jnp.bfloat16)
    bd_parts = [(eye[:, None, :, None] * p[None, :, None, :]).reshape(kdim, odim)
                for p in parts]
    tab_stack = jnp.concatenate(bd_parts, axis=1)        # [kdim, n_parts*odim] bf16

    if cfg["use_mxu_rep"]:
        sel = (jnp.arange(kdim)[None, :] // num_types
               == jnp.arange(rpp)[:, None]).astype(jnp.bfloat16)
        lane_row = jnp.arange(kdim, dtype=jnp.float32)[None, :]
    else:
        sel = jnp.zeros((rpp, kdim), jnp.bfloat16)       # unused on the fallback path
        lane_row = jnp.arange(kdim, dtype=jnp.int32)[None, :]
    return sel, tab_stack, lane_row


def type_dict_node_encoder(node_feats, emb_table, *, tile_rows=8192,
                           out_dtype=None, tables=None):
    """Pallas implementation of TypeDictNodeEncoder.forward.

    node_feats: [N, F] (or [N]) integer node features; column 0 is the type id.
    emb_table:  [num_types, emb_dim] float embedding weight.
    returns     [N, emb_dim] == emb_table[clip(node_feats[:, 0], 0, num_types-1)]
    """
    idx = node_feats[:, 0] if node_feats.ndim == 2 else node_feats
    idx = idx.astype(jnp.int32)
    N = int(idx.shape[0])
    num_types, emb_dim = emb_table.shape
    out_dtype = jnp.dtype(out_dtype or emb_table.dtype)

    cfg = _encoder_config(num_types, emb_dim, emb_table.dtype, out_dtype)
    rpp, emb_pad, kdim, odim = cfg["rpp"], cfg["emb_pad"], cfg["kdim"], cfg["odim"]
    use_mxu_rep, n_parts = cfg["use_mxu_rep"], cfg["n_parts"]

    if tables is None:
        tables = make_encoder_tables(emb_table, out_dtype=out_dtype)
    sel, tab_stack, lane_row = tables

    # Row tiling: tile_r packed rows per grid step, multiple of 16 sublanes (bf16-safe).
    align = rpp * 16
    tile_rows = max(align, min(tile_rows, _round_up(N, align)))
    tile_rows = _round_up(tile_rows, align)
    n_pad = _round_up(N, tile_rows)
    tile_r = tile_rows // rpp
    grid = (n_pad // tile_rows,)

    # Clamp ids (jnp.take semantics for out-of-range), fold the +j*num_types group
    # offsets into the packed index array, and ship it as bf16 (exact for ids < 256).
    idx = jnp.clip(idx, 0, num_types - 1)
    idx_p = jnp.pad(idx, (0, n_pad - N)).reshape(n_pad // rpp, rpp)
    idx_p = idx_p + num_types * jnp.arange(rpp, dtype=jnp.int32)[None, :]
    if use_mxu_rep:
        idx_p = idx_p.astype(jnp.bfloat16)

    def kernel(idx_ref, sel_ref, tab_ref, lane_ref, out_ref):
        if use_mxu_rep:
            # Replicate each id across its lane group on the (idle) MXU, then a single
            # compare + cast builds the bf16 one-hot.
            rep = jnp.dot(idx_ref[...], sel_ref[...],
                          preferred_element_type=jnp.float32)        # [tile_r, kdim]
            onehot = (rep == lane_ref[...]).astype(jnp.bfloat16)
        else:
            # Fallback (kdim > 256): OR of per-position compares, single cast.
            idx_blk = idx_ref[...]
            lane = lane_ref[...]
            m = lane == idx_blk[:, 0:1]
            for j in range(1, rpp):
                m = m | (lane == idx_blk[:, j:j + 1])
            onehot = m.astype(jnp.bfloat16)

        # One single-pass bf16 MXU matmul against the stacked hi/mid/lo block-diag table.
        acc = jnp.dot(onehot, tab_ref[...],
                      preferred_element_type=jnp.float32)             # [tile_r, n_parts*odim]
        res = acc[:, :odim]
        for p in range(1, n_parts):                                   # exact f32 reconstruction
            res = res + acc[:, p * odim:(p + 1) * odim]
        out_ref[...] = res.astype(out_ref.dtype)

    itemsize_out = jnp.dtype(out_dtype).itemsize
    cost = pl.CostEstimate(
        flops=2 * (n_pad // rpp) * (rpp * kdim + kdim * n_parts * odim),
        transcendentals=0,
        bytes_accessed=(idx_p.size * idx_p.dtype.itemsize
                        + sel.size * 2 + tab_stack.size * 2
                        + lane_row.size * lane_row.dtype.itemsize
                        + (n_pad // rpp) * odim * itemsize_out),
    )

    out_packed = pl.pallas_call(
        kernel,
        out_shape=jax.ShapeDtypeStruct((n_pad // rpp, odim), out_dtype),
        grid_spec=pltpu.PrefetchScalarGridSpec(
            num_scalar_prefetch=0,
            grid=grid,
            in_specs=[
                pl.BlockSpec((tile_r, rpp), lambda i: (i, 0)),          # packed ids
                pl.BlockSpec((rpp, kdim), lambda i: (0, 0)),            # selector (resident)
                pl.BlockSpec((kdim, n_parts * odim), lambda i: (0, 0)), # stacked table (resident)
                pl.BlockSpec((1, kdim), lambda i: (0, 0)),              # lane indices (resident)
            ],
            out_specs=pl.BlockSpec((tile_r, odim), lambda i: (i, 0)),
        ),
        compiler_params=pltpu.CompilerParams(
            dimension_semantics=("parallel",),
            vmem_limit_bytes=32 * 1024 * 1024,   # ~10 MiB used at tile_r=2048; safe on all gens
        ),
        cost_estimate=cost,
    )(idx_p, sel, tab_stack, lane_row)

    # Unpack [n_pad/rpp, rpp*emb_pad] -> [n_pad, emb_pad], drop padding rows/cols.
    return out_packed.reshape(n_pad, emb_pad)[:N, :emb_dim]


if __name__ == "__main__":
    key = jax.random.PRNGKey(0)
    k_idx, k_emb = jax.random.split(key)

    # Small shapes consistent with the module: N nodes, F raw feature columns,
    # config.NODE_ENCODER_NUM_TYPES = 32, emb_dim = 32 (HIDDEN_SIZE).
    N, F = 200, 3
    NUM_TYPES, EMB_DIM = 32, 32

    batch_x = jax.random.randint(k_idx, (N, F), 0, NUM_TYPES, dtype=jnp.int32)
    emb_weight = jax.random.normal(k_emb, (NUM_TYPES, EMB_DIM), dtype=jnp.float32)

    # Table prep done once, outside the per-call path (review item 8).
    tables = make_encoder_tables(emb_weight)

    ref = jnp.take(emb_weight, batch_x[:, 0].astype(jnp.int32), axis=0)

    # Multi-step grid (tile_rows=64 just to exercise pipelining at this tiny N).
    out = type_dict_node_encoder(batch_x, emb_weight, tile_rows=64, tables=tables)
    out = jax.block_until_ready(out)
    assert out.shape == (N, EMB_DIM), out.shape
    assert out.dtype == emb_weight.dtype
    assert jnp.allclose(out, ref, atol=1e-6, rtol=1e-6), "mismatch vs reference (tiled)"

    # Default (production) tile configuration.
    out2 = type_dict_node_encoder(batch_x, emb_weight, tables=tables)
    out2 = jax.block_until_ready(out2)
    assert jnp.allclose(out2, ref, atol=1e-6, rtol=1e-6), "mismatch vs reference (default)"

    print("KERNEL_OK")
</pallas_src>

<mosaic_0001>
module attributes {stable_mosaic.version = 11 : i64} {
  func.func @kernel(%arg0: i32, %arg1: memref<16x4xbf16, #tpu.memory_space<vmem>>, %arg2: memref<4x128xbf16, #tpu.memory_space<vmem>>, %arg3: memref<128x384xbf16, #tpu.memory_space<vmem>>, %arg4: memref<1x128xf32, #tpu.memory_space<vmem>>, %arg5: memref<16x128xf32, #tpu.memory_space<vmem>>) attributes {dimension_semantics = [#tpu.dimension_semantics<parallel>], iteration_bounds = array<i64: 4>, scalar_prefetch = 0 : i64, scratch_operands = 0 : i64, tpu.core_type = #tpu.core_type<tc>, window_params = [{transform_indices = @transform_0, window_bounds = array<i64: 16, 4>}, {pipeline_mode = #tpu.pipeline_mode<synchronous>, transform_indices = @transform_1, window_bounds = array<i64: 4, 128>}, {pipeline_mode = #tpu.pipeline_mode<synchronous>, transform_indices = @transform_2, window_bounds = array<i64: 128, 384>}, {pipeline_mode = #tpu.pipeline_mode<synchronous>, transform_indices = @transform_3, window_bounds = array<i64: 1, 128>}, {transform_indices = @transform_4, window_bounds = array<i64: 16, 128>}]} {
    %c0 = arith.constant 0 : index
    %c0_0 = arith.constant 0 : index
    %0 = vector.load %arg1[%c0, %c0_0] : memref<16x4xbf16, #tpu.memory_space<vmem>>, vector<16x4xbf16>
    %c0_1 = arith.constant 0 : index
    %c0_2 = arith.constant 0 : index
    %1 = vector.load %arg2[%c0_1, %c0_2] : memref<4x128xbf16, #tpu.memory_space<vmem>>, vector<4x128xbf16>
    %cst = arith.constant dense<0.000000e+00> : vector<16x128xf32>
    %2 = tpu.matmul %0, %1, %cst {dimension_numbers = #tpu.dot_dimension_numbers<[1], [0], [0], [1], [0, 0, 1, 1], [], []>} : vector<16x4xbf16>, vector<4x128xbf16>, vector<16x128xf32> -> vector<16x128xf32>
    %c0_3 = arith.constant 0 : index
    %c0_4 = arith.constant 0 : index
    %3 = vector.load %arg4[%c0_3, %c0_4] : memref<1x128xf32, #tpu.memory_space<vmem>>, vector<1x128xf32>
    %4 = vector.broadcast %3 : vector<1x128xf32> to vector<16x128xf32>
    %5 = arith.cmpf oeq, %2, %4 : vector<16x128xf32>
    %6 = arith.extui %5 : vector<16x128xi1> to vector<16x128xi32>
    %7 = arith.sitofp %6 : vector<16x128xi32> to vector<16x128xf32>
    %8 = arith.truncf %7 : vector<16x128xf32> to vector<16x128xbf16>
    %c0_5 = arith.constant 0 : index
    %c0_6 = arith.constant 0 : index
    %9 = vector.load %arg3[%c0_5, %c0_6] : memref<128x384xbf16, #tpu.memory_space<vmem>>, vector<128x384xbf16>
    %cst_7 = arith.constant dense<0.000000e+00> : vector<16x384xf32>
    %10 = tpu.matmul %8, %9, %cst_7 {dimension_numbers = #tpu.dot_dimension_numbers<[1], [0], [0], [1], [0, 0, 1, 1], [], []>} : vector<16x128xbf16>, vector<128x384xbf16>, vector<16x384xf32> -> vector<16x384xf32>
    %11 = vector.extract_strided_slice %10 {offsets = [0, 0], sizes = [16, 128], strides = [1, 1]} : vector<16x384xf32> to vector<16x128xf32>
    %12 = vector.extract_strided_slice %10 {offsets = [0, 128], sizes = [16, 128], strides = [1, 1]} : vector<16x384xf32> to vector<16x128xf32>
    %13 = arith.addf %11, %12 : vector<16x128xf32>
    %14 = vector.extract_strided_slice %10 {offsets = [0, 256], sizes = [16, 128], strides = [1, 1]} : vector<16x384xf32> to vector<16x128xf32>
    %15 = arith.addf %13, %14 : vector<16x128xf32>
    %c0_8 = arith.constant 0 : index
    %c0_9 = arith.constant 0 : index
    %16 = vector.load %arg5[%c0_8, %c0_9] : memref<16x128xf32, #tpu.memory_space<vmem>>, vector<16x128xf32>
    tpu.vector_store %arg5[%c0_8, %c0_9], %15 {strides = array<i32>} : memref<16x128xf32, #tpu.memory_space<vmem>>, vector<16x128xf32>,
    return
  }
  func.func @transform_0(%arg0: i32) -> (i32, i32) {
    %c0_i32 = arith.constant 0 : i32
    %c0_i32_0 = arith.constant 0 : i32
    return %arg0, %c0_i32 : i32, i32
  }
  func.func @transform_1(%arg0: i32) -> (i32, i32) {
    %c0_i32 = arith.constant 0 : i32
    %c0_i32_0 = arith.constant 0 : i32
    %c0_i32_1 = arith.constant 0 : i32
    return %c0_i32, %c0_i32_0 : i32, i32
  }
  func.func @transform_2(%arg0: i32) -> (i32, i32) {
    %c0_i32 = arith.constant 0 : i32
    %c0_i32_0 = arith.constant 0 : i32
    %c0_i32_1 = arith.constant 0 : i32
    return %c0_i32, %c0_i32_0 : i32, i32
  }
  func.func @transform_3(%arg0: i32) -> (i32, i32) {
    %c0_i32 = arith.constant 0 : i32
    %c0_i32_0 = arith.constant 0 : i32
    %c0_i32_1 = arith.constant 0 : i32
    return %c0_i32, %c0_i32_0 : i32, i32
  }
  func.func @transform_4(%arg0: i32) -> (i32, i32) {
    %c0_i32 = arith.constant 0 : i32
    %c0_i32_0 = arith.constant 0 : i32
    return %arg0, %c0_i32 : i32, i32
  }
}

</mosaic_0001>

<llo_original>
// kernel: tpu_custom_call.1
$region0: #{tpu_custom_call.1}
  #allocation0 [shape = 'u32[]', space=smem, size = 0x4, offset = 0x4, fixed_abs, tag = 'smem constant byte address 0x4 - core index']
  #allocation1 [shape = 'u32[144,128]{1,0:T(1,128)}', space=vmem, size = 0x12000, scoped, tag = 'internal scratch']
  %s0 = inlined_call_operand.vmem [shape: bf16[64,4], index: 0, kind: input, shape index: {}]
  %s1 = inlined_call_operand.vmem [shape: bf16[4,128], index: 1, kind: input, shape index: {}]
  %s2 = inlined_call_operand.hbm [shape: bf16[128,384], index: 2, kind: input, shape index: {}]
  %s3 = inlined_call_operand.vmem [shape: f32[1,128], index: 3, kind: input, shape index: {}]
  %s4 = inlined_call_operand.hbm [shape: f32[64,128], index: 4, kind: output, shape index: {}]
  %s5 = sld [smem:[#allocation0]]
  $region53: #{tpu_custom_call.1} parent=0
    _
  %s7 = ssub.s32 1, %s5
  %s8 = scalar_select 0, %s7, %s5
  $region1: #{tpu_custom_call.1} parent=0
    #allocation2 [shape = 'u8[98304]{0}', space=vmem, size = 0x18000, scoped, tag = 'input window, operand 2, single buffered']
    #allocation3 [shape = 's32[2]{0}', space=sflag, size = 0x8, scoped, tag = 'scoped memory for tpu_custom_call.1']
    #allocation4 [shape = 's32[2]{0}', space=sflag, size = 0x8, scoped, tag = 'scoped memory for tpu_custom_call.1']
    #allocation5 [shape = 'u8[16384]{0}', space=vmem, size = 0x4000, scoped, tag = 'output window, operand 0']
    %9 = vsyncpa [#allocation3], 0
    %10 = vsyncpa [#allocation4], 0
    %s11 = scalar_lea.sflag [#allocation4], 1
    %12 = vsyncpa %s11, 0
    loop: start=0, step=1, limit=6
    $region2: #{tpu_custom_call.1} parent=1 // loop_pre_header
      _
    $region3: #{tpu_custom_call.1} parent=1 // loop_header
      %s14 = sphi 0, %s18
      %p15 = scmp.ge.s32.totalorder %s14, 6
      %s24 = sphi 0, %s26
      %s27 = sphi 0, %s24
      %s28 = sphi 0, %s27
      %s44 = sphi 0, %s28
      %s48 = sphi 0, %s48
      %s50 = sphi 0, %s48
      %s51 = sphi 0, %s50
      %s65 = sphi 0, %s51
      %s69 = sphi 0, %s69
      %s71 = sphi 0, %s69
      %s72 = sphi 0, %s71
      %s86 = sphi 0, %s72
      %s90 = sphi 0, %s90
      %s92 = sphi 0, %s90
      %s93 = sphi 0, %s92
      %s107 = sphi 0, %s93
      %s113 = sphi 0, %s115
      %s116 = sphi 0, %s113
      %s117 = sphi 0, %s116
      %s133 = sphi 0, %s117
    $region4: #{tpu_custom_call.1} parent=1 // loop_header_branch
      %17 = sbr.rel (%p15) target = $region8
    $region5: #{tpu_custom_call.1} parent=1 // loop_body
      %s19 = ssub.s32 %s14, 1
      %s20 = ssub.s32 %s14, 2
      %s21 = sadd.s32 %s14, 1
      %s22 = ssub.s32 %s14, %s21
      %p23 = scmp.eq.s32.totalorder %s22, 0
      %s25 = sadd.s32 %s24, 1
      %s26 = scalar_select %p23, %s24, %s25
      %p29 = pneg %p23
      %p30 = scmp.eq.s32.totalorder %s14, 3
      %p31 = por %p29, %p30
      %p32 = scmp.ne.s32.totalorder %s24, %s27
      %p33 = scmp.eq.s32.totalorder %s14, 0
      %p34 = por %p32, %p33
      %p35 = scmp.ne.s32.totalorder %s24, %s27
      %p36 = scmp.eq.s32.totalorder %s19, 3
      %p37 = por %p35, %p36
      %p38 = scmp.ne.s32.totalorder %s27, %s28
      %p39 = scmp.eq.s32.totalorder %s19, 0
      %p40 = por %p38, %p39
      %p41 = scmp.ne.s32.totalorder %s27, %s28
      %p42 = scmp.eq.s32.totalorder %s20, 3
      %p43 = por %p41, %p42
      %p45 = scmp.ne.s32.totalorder %s28, %s44
      %p46 = scmp.eq.s32.totalorder %s20, 0
      %p47 = por %p45, %p46
      %s49 = sadd.s32 %s48, 1
      %p52 = scmp.eq.s32.totalorder %s14, 3
      %p53 = scmp.ne.s32.totalorder %s48, %s50
      %p54 = scmp.eq.s32.totalorder %s14, 0
      %p55 = por %p53, %p54
      %p56 = scmp.ne.s32.totalorder %s48, %s50
      %p57 = scmp.eq.s32.totalorder %s19, 3
      %p58 = por %p56, %p57
      %p59 = scmp.ne.s32.totalorder %s50, %s51
      %p60 = scmp.eq.s32.totalorder %s19, 0
      %p61 = por %p59, %p60
      %p62 = scmp.ne.s32.totalorder %s50, %s51
      %p63 = scmp.eq.s32.totalorder %s20, 3
      %p64 = por %p62, %p63
      %p66 = scmp.ne.s32.totalorder %s51, %s65
      %p67 = scmp.eq.s32.totalorder %s20, 0
      %p68 = por %p66, %p67
      %s70 = sadd.s32 %s69, 1
      %p73 = scmp.eq.s32.totalorder %s14, 3
      %p74 = scmp.ne.s32.totalorder %s69, %s71
      %p75 = scmp.eq.s32.totalorder %s14, 0
      %p76 = por %p74, %p75
      %p77 = scmp.ne.s32.totalorder %s69, %s71
      %p78 = scmp.eq.s32.totalorder %s19, 3
      %p79 = por %p77, %p78
      %p80 = scmp.ne.s32.totalorder %s71, %s72
      %p81 = scmp.eq.s32.totalorder %s19, 0
      %p82 = por %p80, %p81
      %p83 = scmp.ne.s32.totalorder %s71, %s72
      %p84 = scmp.eq.s32.totalorder %s20, 3
      %p85 = por %p83, %p84
      %p87 = scmp.ne.s32.totalorder %s72, %s86
      %p88 = scmp.eq.s32.totalorder %s20, 0
      %p89 = por %p87, %p88
      %s91 = sadd.s32 %s90, 1
      %p94 = scmp.eq.s32.totalorder %s14, 3
      %p95 = scmp.ne.s32.totalorder %s90, %s92
      %p96 = scmp.eq.s32.totalorder %s14, 0
      %p97 = por %p95, %p96
      %p98 = scmp.ne.s32.totalorder %s90, %s92
      %p99 = scmp.eq.s32.totalorder %s19, 3
      %p100 = por %p98, %p99
      %p101 = scmp.ne.s32.totalorder %s92, %s93
      %p102 = scmp.eq.s32.totalorder %s19, 0
      %p103 = por %p101, %p102
      %p104 = scmp.ne.s32.totalorder %s92, %s93
      %p105 = scmp.eq.s32.totalorder %s20, 3
      %p106 = por %p104, %p105
      %p108 = scmp.ne.s32.totalorder %s93, %s107
      %p109 = scmp.eq.s32.totalorder %s20, 0
      %p110 = por %p108, %p109
      %s111 = ssub.s32 %s14, %s21
      %p112 = scmp.eq.s32.totalorder %s111, 0
      %s114 = sadd.s32 %s113, 1
      %s115 = scalar_select %p112, %s113, %s114
      %p118 = pneg %p112
      %p119 = scmp.eq.s32.totalorder %s14, 3
      %p120 = por %p118, %p119
      %p121 = scmp.ne.s32.totalorder %s113, %s116
      %p122 = scmp.eq.s32.totalorder %s14, 0
      %p123 = por %p121, %p122
      %p124 = scmp.ne.s32.totalorder %s113, %s116
      %p125 = scmp.eq.s32.totalorder %s19, 3
      %p126 = por %p124, %p125
      %p127 = scmp.ne.s32.totalorder %s116, %s117
      %p128 = scmp.eq.s32.totalorder %s19, 0
      %p129 = por %p127, %p128
      %p130 = scmp.ne.s32.totalorder %s116, %s117
      %p131 = scmp.eq.s32.totalorder %s20, 3
      %p132 = por %p130, %p131
      %p134 = scmp.ne.s32.totalorder %s117, %s133
      %p135 = scmp.eq.s32.totalorder %s20, 0
      %p136 = por %p134, %p135
      %p137 = scmp.le.s32.totalorder 1, %s14
      %p138 = scmp.lt.s32.totalorder %s14, 5
      %p139 = pnand %p137, %p138
      %p140 = pneg %p139
      // Predicated region
      $region9: #{tpu_custom_call.1} parent=5 // pred_check
        _
      $region10: #{tpu_custom_call.1} parent=5 // pred_check_branch
        %142 = sbr.rel (%p139) target = $region12
      $region11: #{tpu_custom_call.1} parent=5 // pred_region
        %s143 = ssub.s32 %s14, 1
        // Predicated region
        $region13: #{tpu_custom_call.1} parent=11 // pred_check
          %p144 = pneg %p61
        $region14: #{tpu_custom_call.1} parent=11 // pred_check_branch
          %146 = sbr.rel (%p144) target = $region16
        $region15: #{tpu_custom_call.1} parent=11 // pred_region
          _
        $region16: #{tpu_custom_call.1} parent=11 // pred_fallthru
          _
        // Predicated region
        $region17: #{tpu_custom_call.1} parent=11 // pred_check
          %p147 = pneg %p82
        $region18: #{tpu_custom_call.1} parent=11 // pred_check_branch
          %149 = sbr.rel (%p147) target = $region20
        $region19: #{tpu_custom_call.1} parent=11 // pred_region
          %s151 = ssub.s32 3072, 3072
          %152 = vsyncadd [#allocation3], %s151
          %s153 = sshll.u32 [#allocation2], 4
          %s154 = int_to_ptr.vmem [resolvable:$true] %s153
          %159 = dma.hbm_to_vmem [thread:$0]  %s2, 3072, %s154, [#allocation3], 192, 192, 12
        $region20: #{tpu_custom_call.1} parent=11 // pred_fallthru
          _
        // Predicated region
        $region21: #{tpu_custom_call.1} parent=11 // pred_check
          %p160 = pneg %p103
        $region22: #{tpu_custom_call.1} parent=11 // pred_check_branch
          %162 = sbr.rel (%p160) target = $region24
        $region23: #{tpu_custom_call.1} parent=11 // pred_region
          _
        $region24: #{tpu_custom_call.1} parent=11 // pred_fallthru
          _
      $region12: #{tpu_custom_call.1} parent=5 // pred_fallthru
        _
      %p163 = scmp.lt.s32.totalorder %s14, 4
      // Predicated region
      $region25: #{tpu_custom_call.1} parent=5 // pred_check
        %p164 = pneg %p163
      $region26: #{tpu_custom_call.1} parent=5 // pred_check_branch
        %166 = sbr.rel (%p164) target = $region28
      $region27: #{tpu_custom_call.1} parent=5 // pred_region
        // Predicated region
        $region29: #{tpu_custom_call.1} parent=27 // pred_check
          %p167 = pneg %p34
        $region30: #{tpu_custom_call.1} parent=27 // pred_check_branch
          %169 = sbr.rel (%p167) target = $region32
        $region31: #{tpu_custom_call.1} parent=27 // pred_region
          %s170 = smul.u32 2, %s14
          %p171 = scmp.lt.s32.totalorder %s170, 7
          %s172 = scalar_select %p171, %s170, 7
          %s173 = smul.addr %s172, 4
          %s174 = scalar_lea.vmem %s0, %s173
          %s175 = smul.u32 2, %s14
        $region32: #{tpu_custom_call.1} parent=27 // pred_fallthru
          _
      $region28: #{tpu_custom_call.1} parent=5 // pred_fallthru
        _
      %p176 = scmp.le.s32.totalorder 1, %s14
      %p177 = scmp.lt.s32.totalorder %s14, 5
      %p178 = pnand %p176, %p177
      %p179 = pneg %p178
      // Predicated region
      $region33: #{tpu_custom_call.1} parent=5 // pred_check
        _
      $region34: #{tpu_custom_call.1} parent=5 // pred_check_branch
        %181 = sbr.rel (%p178) target = $region36
      $region35: #{tpu_custom_call.1} parent=5 // pred_region
        %s182 = ssub.s32 %s14, 1
        // Predicated region
        $region37: #{tpu_custom_call.1} parent=35 // pred_check
          %p183 = pneg %p82
        $region38: #{tpu_custom_call.1} parent=35 // pred_check_branch
          %185 = sbr.rel (%p183) target = $region40
        $region39: #{tpu_custom_call.1} parent=35 // pred_region
          %186 = dma.done [#allocation3], 3072
        $region40: #{tpu_custom_call.1} parent=35 // pred_fallthru
          _
        %s187 = smul.u32 2, %s19
        %p188 = scmp.lt.s32.totalorder %s187, 7
        %s189 = scalar_select %p188, %s187, 7
        %s190 = smul.addr %s189, 4
        %s191 = scalar_lea.vmem %s0, %s190
        %p192 = pneg %p40
        %p193 = pneg %p37
        %p194 = pneg %p61
        %p195 = pneg %p58
        %p196 = pneg %p82
        %p197 = pneg %p79
        %p198 = pneg %p103
        %p199 = pneg %p100
        %p200 = pneg %p129
        %p201 = pneg %p126
        %s202 = sand.u32 %s116, 1
        %s203 = scalar_lea.sflag [#allocation4], %s202
        %s204 = sand.u32 %s116, 1
        %s205 = smul.addr %s204, 16
        %s206 = scalar_lea.vmem [#allocation5], %s205
        %s207 = smul.u32 2, %s19
        %p208 = scmp.lt.s32.totalorder %s207, 7
        %s209 = scalar_select %p208, %s207, 7
        %s210 = smul.addr %s209, 4
        %s211 = scalar_lea.vmem %s0, %s210
        %s212 = smul.u32 2, %s19
        %s213 = smul.u32 2, %s19
        %v215 = vld [vmem:[%s211] sm:$0xf]
        %v216 = vld [vmem:[%s211 + $0x4] sm:$0xf]
        %v217 = vld [vmem:[%s1] sm:$0x3]
        %v220 = vunpack.c.l.b16 %v215
        %v221 = vunpack.c.l.b16 %v216
        %v222 = vpack.c.b16 %v221, %v220
        %vm223 = vcmask 31744
        %v225 = vsel %vm223, %v222, 0
        %vm227 = vcmask 1041408
        %v229 = vsel %vm227, %v217, 0
        %231 = vmatprep.subr.bf16.mxu0 0
        %232 = vmatpush1.bf16.msra.mxu0 %v229
        %233 = vmatprep.subr.bf16.mxu0 0
        %234 = vmatpush1.bf16.msra.mxu0 0
        %235 = vmatprep.subr.bf16.mxu0 0
        %236 = vmatpush1.bf16.msra.mxu0 0
        %237 = vmatprep.subr.bf16.mxu0 0
        %238 = vmatpush1.bf16.msra.mxu0 0
        %239 = vmatprep.subr.bf16.mxu0 0
        %240 = vmatpush1.bf16.msra.mxu0 0
        %241 = vmatprep.subr.bf16.mxu0 0
        %242 = vmatpush1.bf16.msra.mxu0 0
        %243 = vmatprep.subr.bf16.mxu0 0
        %244 = vmatpush1.bf16.msra.mxu0 0
        %245 = vmatprep.subr.bf16.mxu0 0
        %246 = vmatpush1.bf16.msra.mxu0 0
        %247 = vmatprep.subr.bf16.mxu0 0
        %248 = vmatpush1.bf16.msra.mxu0 0
        %249 = vmatprep.subr.bf16.mxu0 0
        %250 = vmatpush1.bf16.msra.mxu0 0
        %251 = vmatprep.subr.bf16.mxu0 0
        %252 = vmatpush1.bf16.msra.mxu0 0
        %253 = vmatprep.subr.bf16.mxu0 0
        %254 = vmatpush1.bf16.msra.mxu0 0
        %255 = vmatprep.subr.bf16.mxu0 0
        %256 = vmatpush1.bf16.msra.mxu0 0
        %257 = vmatprep.subr.bf16.mxu0 0
        %258 = vmatpush1.bf16.msra.mxu0 0
        %259 = vmatprep.subr.bf16.mxu0 0
        %260 = vmatpush1.bf16.msra.mxu0 0
        %261 = vmatprep.subr.bf16.mxu0 0
        %262 = vmatpush1.bf16.msra.mxu0 0
        %263 = vmatprep.mubr.bf16.mxu0 0
        %264 = vmatmul.mubr.bf16.gmra.mrb[0].mxu0 %v225
        %v265 = vpop.f32.mrb[0].mxu0
        %v266 = vadd.f32 0.0, %v265
        %v267 = vpop.f32.mrb[0].mxu0
        %v268 = vpop.f32.mrb[0].mxu0
        %v269 = vadd.f32 0.0, %v268
        %v270 = vpop.f32.mrb[0].mxu0
        %271 = vdwg.mxu0
        %v272 = vld [vmem:[%s3] sm:$0x1]
        %v274 = vlaneseq
        %v275 = vshrl.u32 %v274, 7
        %v276 = vsub.s32 0, %v275
        %v277 = vrot.slane %v272, %v276
        %vm279 = vcmp.eq.f32.partialorder %v266, %v277
        %vm280 = vcmp.eq.f32.partialorder %v269, %v277
        %v281 = vsel %vm279, 1, 0
        %v282 = vsel %vm280, 1, 0
        %v283 = vcvt.s32.f32 %v281
        %v284 = vcvt.s32.f32 %v282
        %v285 = vpack.c.bf16 %v284, %v283
        %v286 = vld [vmem:[#allocation2] sm:$0xff]
        %v287 = vld [vmem:[#allocation2 + $0x8] sm:$0xf]
        %v288 = vld [vmem:[#allocation2 + $0xc] sm:$0xff]
        %v289 = vld [vmem:[#allocation2 + $0x14] sm:$0xf]
        %v290 = vld [vmem:[#allocation2 + $0x18] sm:$0xff]
        %v291 = vld [vmem:[#allocation2 + $0x20] sm:$0xf]
        %v292 = vld [vmem:[#allocation2 + $0x24] sm:$0xff]
        %v293 = vld [vmem:[#allocation2 + $0x2c] sm:$0xf]
        %v294 = vld [vmem:[#allocation2 + $0x30] sm:$0xff]
        %v295 = vld [vmem:[#allocation2 + $0x38] sm:$0xf]
        %v296 = vld [vmem:[#allocation2 + $0x3c] sm:$0xff]
        %v297 = vld [vmem:[#allocation2 + $0x44] sm:$0xf]
        %v298 = vld [vmem:[#allocation2 + $0x48] sm:$0xff]
        %v299 = vld [vmem:[#allocation2 + $0x50] sm:$0xf]
        %v300 = vld [vmem:[#allocation2 + $0x54] sm:$0xff]
        %v301 = vld [vmem:[#allocation2 + $0x5c] sm:$0xf]
        %v302 = vld [vmem:[#allocation2 + $0x60] sm:$0xff]
        %v303 = vld [vmem:[#allocation2 + $0x68] sm:$0xf]
        %v304 = vld [vmem:[#allocation2 + $0x6c] sm:$0xff]
        %v305 = vld [vmem:[#allocation2 + $0x74] sm:$0xf]
        %v306 = vld [vmem:[#allocation2 + $0x78] sm:$0xff]
        %v307 = vld [vmem:[#allocation2 + $0x80] sm:$0xf]
        %v308 = vld [vmem:[#allocation2 + $0x84] sm:$0xff]
        %v309 = vld [vmem:[#allocation2 + $0x8c] sm:$0xf]
        %v310 = vld [vmem:[#allocation2 + $0x90] sm:$0xff]
        %v311 = vld [vmem:[#allocation2 + $0x98] sm:$0xf]
        %v312 = vld [vmem:[#allocation2 + $0x9c] sm:$0xff]
        %v313 = vld [vmem:[#allocation2 + $0xa4] sm:$0xf]
        %v314 = vld [vmem:[#allocation2 + $0xa8] sm:$0xff]
        %v315 = vld [vmem:[#allocation2 + $0xb0] sm:$0xf]
        %v316 = vld [vmem:[#allocation2 + $0xb4] sm:$0xff]
        %v317 = vld [vmem:[#allocation2 + $0xbc] sm:$0xf]
        %v350 = vunpack.c.l.b16 %v286
        %v351 = vunpack.c.h.b16 %v286
        %v352 = vunpack.c.l.b16 %v287
        %v353 = vunpack.c.l.b16 %v288
        %v354 = vunpack.c.h.b16 %v288
        %v355 = vunpack.c.l.b16 %v289
        %v356 = vunpack.c.l.b16 %v290
        %v357 = vunpack.c.h.b16 %v290
        %v358 = vunpack.c.l.b16 %v291
        %v359 = vunpack.c.l.b16 %v292
        %v360 = vunpack.c.h.b16 %v292
        %v361 = vunpack.c.l.b16 %v293
        %v362 = vunpack.c.l.b16 %v294
        %v363 = vunpack.c.h.b16 %v294
        %v364 = vunpack.c.l.b16 %v295
        %v365 = vunpack.c.l.b16 %v296
        %v366 = vunpack.c.h.b16 %v296
        %v367 = vunpack.c.l.b16 %v297
        %v368 = vunpack.c.l.b16 %v298
        %v369 = vunpack.c.h.b16 %v298
        %v370 = vunpack.c.l.b16 %v299
        %v371 = vunpack.c.l.b16 %v300
        %v372 = vunpack.c.h.b16 %v300
        %v373 = vunpack.c.l.b16 %v301
        %v374 = vunpack.c.l.b16 %v302
        %v375 = vunpack.c.h.b16 %v302
        %v376 = vunpack.c.l.b16 %v303
        %v377 = vunpack.c.l.b16 %v304
        %v378 = vunpack.c.h.b16 %v304
        %v379 = vunpack.c.l.b16 %v305
        %v380 = vunpack.c.l.b16 %v306
        %v381 = vunpack.c.h.b16 %v306
        %v382 = vunpack.c.l.b16 %v307
        %v383 = vunpack.c.l.b16 %v308
        %v384 = vunpack.c.h.b16 %v308
        %v385 = vunpack.c.l.b16 %v309
        %v386 = vunpack.c.l.b16 %v310
        %v387 = vunpack.c.h.b16 %v310
        %v388 = vunpack.c.l.b16 %v311
        %v389 = vunpack.c.l.b16 %v312
        %v390 = vunpack.c.h.b16 %v312
        %v391 = vunpack.c.l.b16 %v313
        %v392 = vunpack.c.l.b16 %v314
        %v393 = vunpack.c.h.b16 %v314
        %v394 = vunpack.c.l.b16 %v315
        %v395 = vunpack.c.l.b16 %v316
        %v396 = vunpack.c.h.b16 %v316
        %v397 = vunpack.c.l.b16 %v317
        %v398 = vpack.c.b16 %v353, %v350
        %v399 = vpack.c.b16 %v354, %v351
        %v400 = vpack.c.b16 %v355, %v352
        %v401 = vpack.c.b16 %v359, %v356
        %v402 = vpack.c.b16 %v360, %v357
        %v403 = vpack.c.b16 %v361, %v358
        %v404 = vpack.c.b16 %v365, %v362
        %v405 = vpack.c.b16 %v366, %v363
        %v406 = vpack.c.b16 %v367, %v364
        %v407 = vpack.c.b16 %v371, %v368
        %v408 = vpack.c.b16 %v372, %v369
        %v409 = vpack.c.b16 %v373, %v370
        %v410 = vpack.c.b16 %v377, %v374
        %v411 = vpack.c.b16 %v378, %v375
        %v412 = vpack.c.b16 %v379, %v376
        %v413 = vpack.c.b16 %v383, %v380
        %v414 = vpack.c.b16 %v384, %v381
        %v415 = vpack.c.b16 %v385, %v382
        %v416 = vpack.c.b16 %v389, %v386
        %v417 = vpack.c.b16 %v390, %v387
        %v418 = vpack.c.b16 %v391, %v388
        %v419 = vpack.c.b16 %v395, %v392
        %v420 = vpack.c.b16 %v396, %v393
        %v421 = vpack.c.b16 %v397, %v394
        %446 = vmatprep.subr.bf16.mxu0 %v399
        %447 = vmatpush1.bf16.msra.mxu0 %v398
        %448 = vmatprep.subr.bf16.mxu0 %v402
        %449 = vmatpush1.bf16.msra.mxu0 %v401
        %450 = vmatprep.subr.bf16.mxu0 %v405
        %451 = vmatpush1.bf16.msra.mxu0 %v404
        %452 = vmatprep.subr.bf16.mxu0 %v408
        %453 = vmatpush1.bf16.msra.mxu0 %v407
        %454 = vmatprep.subr.bf16.mxu0 %v411
        %455 = vmatpush1.bf16.msra.mxu0 %v410
        %456 = vmatprep.subr.bf16.mxu0 %v414
        %457 = vmatpush1.bf16.msra.mxu0 %v413
        %458 = vmatprep.subr.bf16.mxu0 %v417
        %459 = vmatpush1.bf16.msra.mxu0 %v416
        %460 = vmatprep.subr.bf16.mxu0 %v420
        %461 = vmatpush1.bf16.msra.mxu0 %v419
        %462 = vmatprep.subr.bf16.mxu0 0
        %463 = vmatpush1.bf16.msra.mxu0 0
        %464 = vmatprep.subr.bf16.mxu0 0
        %465 = vmatpush1.bf16.msra.mxu0 0
        %466 = vmatprep.subr.bf16.mxu0 0
        %467 = vmatpush1.bf16.msra.mxu0 0
        %468 = vmatprep.subr.bf16.mxu0 0
        %469 = vmatpush1.bf16.msra.mxu0 0
        %470 = vmatprep.subr.bf16.mxu0 0
        %471 = vmatpush1.bf16.msra.mxu0 0
        %472 = vmatprep.subr.bf16.mxu0 0
        %473 = vmatpush1.bf16.msra.mxu0 0
        %474 = vmatprep.subr.bf16.mxu0 0
        %475 = vmatpush1.bf16.msra.mxu0 0
        %476 = vmatprep.subr.bf16.mxu0 0
        %477 = vmatpush1.bf16.msra.mxu0 0
        %478 = vmatprep.mubr.bf16.mxu0 0
        %479 = vmatmul.mubr.bf16.gmra.mrb[0].mxu0 %v285
        %v480 = vpop.f32.mrb[0].mxu0
        %v481 = vadd.f32 0.0, %v480
        %v482 = vpop.f32.mrb[0].mxu0
        %v483 = vadd.f32 0.0, %v482
        %v484 = vpop.f32.mrb[0].mxu0
        %v485 = vadd.f32 0.0, %v484
        %v486 = vpop.f32.mrb[0].mxu0
        %v487 = vadd.f32 0.0, %v486
        %488 = vdwg.mxu0
        %489 = vmatprep.subr.bf16.mxu0 0
        %490 = vmatpush1.bf16.msra.mxu0 %v400
        %491 = vmatprep.subr.bf16.mxu0 0
        %492 = vmatpush1.bf16.msra.mxu0 %v403
        %493 = vmatprep.subr.bf16.mxu0 0
        %494 = vmatpush1.bf16.msra.mxu0 %v406
        %495 = vmatprep.subr.bf16.mxu0 0
        %496 = vmatpush1.bf16.msra.mxu0 %v409
        %497 = vmatprep.subr.bf16.mxu0 0
        %498 = vmatpush1.bf16.msra.mxu0 %v412
        %499 = vmatprep.subr.bf16.mxu0 0
        %500 = vmatpush1.bf16.msra.mxu0 %v415
        %501 = vmatprep.subr.bf16.mxu0 0
        %502 = vmatpush1.bf16.msra.mxu0 %v418
        %503 = vmatprep.subr.bf16.mxu0 0
        %504 = vmatpush1.bf16.msra.mxu0 %v421
        %505 = vmatprep.subr.bf16.mxu0 0
        %506 = vmatpush1.bf16.msra.mxu0 0
        %507 = vmatprep.subr.bf16.mxu0 0
        %508 = vmatpush1.bf16.msra.mxu0 0
        %509 = vmatprep.subr.bf16.mxu0 0
        %510 = vmatpush1.bf16.msra.mxu0 0
        %511 = vmatprep.subr.bf16.mxu0 0
        %512 = vmatpush1.bf16.msra.mxu0 0
        %513 = vmatprep.subr.bf16.mxu0 0
        %514 = vmatpush1.bf16.msra.mxu0 0
        %515 = vmatprep.subr.bf16.mxu0 0
        %516 = vmatpush1.bf16.msra.mxu0 0
        %517 = vmatprep.subr.bf16.mxu0 0
        %518 = vmatpush1.bf16.msra.mxu0 0
        %519 = vmatprep.subr.bf16.mxu0 0
        %520 = vmatpush1.bf16.msra.mxu0 0
        %521 = vmatprep.mubr.bf16.mxu0 0
        %522 = vmatmul.mubr.bf16.gmra.mrb[0].mxu0 %v285
        %v523 = vpop.f32.mrb[0].mxu0
        %v524 = vadd.f32 0.0, %v523
        %v525 = vpop.f32.mrb[0].mxu0
        %v526 = vpop.f32.mrb[0].mxu0
        %v527 = vadd.f32 0.0, %v526
        %v528 = vpop.f32.mrb[0].mxu0
        %529 = vdwg.mxu0
        %v530 = vadd.f32 %v481, %v483
        %v531 = vadd.f32 %v485, %v487
        %v532 = vadd.f32 %v530, %v524
        %v533 = vadd.f32 %v531, %v527
        %534 = vst [vmem:[%s206] sm:$0xff] %v532
        %535 = vst [vmem:[%s206 + $0x8] sm:$0xff] %v533
        %s536 = sand.u32 %s116, 1
        %s537 = scalar_lea.sflag [#allocation4], %s536
        %s538 = sand.u32 %s116, 1
        %s539 = smul.addr %s538, 16
        %s540 = scalar_lea.vmem [#allocation5], %s539
        // Predicated region
        $region41: #{tpu_custom_call.1} parent=35 // pred_check
          %p541 = pneg %p126
        $region42: #{tpu_custom_call.1} parent=35 // pred_check_branch
          %543 = sbr.rel (%p541) target = $region44
        $region43: #{tpu_custom_call.1} parent=35 // pred_region
          %s544 = smul.u32 2, %s19
          %s546 = ssub.s32 256, 256
          %547 = vsyncadd %s537, %s546
          %s548 = smul.addr %s544, 128
          %s549 = scalar_lea.hbm %s4, %s548
          %s550 = sshll.u32 %s540, 4
          %s551 = int_to_ptr.vmem [resolvable:$true] %s550
          %556 = dma.vmem_to_hbm [thread:$0]  %s551, 256, %s549, %s537, 128, 128, 8
        $region44: #{tpu_custom_call.1} parent=35 // pred_fallthru
          _
      $region36: #{tpu_custom_call.1} parent=5 // pred_fallthru
        _
      %p557 = scmp.le.s32.totalorder 2, %s14
      // Predicated region
      $region45: #{tpu_custom_call.1} parent=5 // pred_check
        %p558 = pneg %p557
      $region46: #{tpu_custom_call.1} parent=5 // pred_check_branch
        %560 = sbr.rel (%p558) target = $region48
      $region47: #{tpu_custom_call.1} parent=5 // pred_region
        %s561 = ssub.s32 %s14, 2
        // Predicated region
        $region49: #{tpu_custom_call.1} parent=47 // pred_check
          %p562 = pneg %p132
        $region50: #{tpu_custom_call.1} parent=47 // pred_check_branch
          %564 = sbr.rel (%p562) target = $region52
        $region51: #{tpu_custom_call.1} parent=47 // pred_region
          %s565 = sand.u32 %s117, 1
          %s566 = scalar_lea.sflag [#allocation4], %s565
          %s567 = sand.u32 %s117, 1
          %s568 = smul.addr %s567, 16
          %s569 = scalar_lea.vmem [#allocation5], %s568
          %570 = dma.done %s566, 256
        $region52: #{tpu_custom_call.1} parent=47 // pred_fallthru
          _
      $region48: #{tpu_custom_call.1} parent=5 // pred_fallthru
        _
    $region6: #{tpu_custom_call.1} parent=1 // loop_footer
      %s18 = sadd.s32 1, %s14
    $region7: #{tpu_custom_call.1} parent=1 // loop_footer_branch
      %13 = sbr.rel target = $region3
    $region8: #{tpu_custom_call.1} parent=1 // loop_exit
      _
    %571 = vsyncpa [#allocation3], 1
    %s572 = scalar_lea.sflag [#allocation3], 1
    %573 = vsyncpa %s572, 1
    %574 = vsyncpa [#allocation4], 1
    %s575 = scalar_lea.sflag [#allocation4], 1
    %576 = vsyncpa %s575, 1

</llo_original>
